<compile_context>
chip_gen: v6e
topology: v6e:2x2x1
jax: 0.10.0
libtpu: 0.0.40
codegen_flags: <defaults>
</compile_context>

<pallas_src>
import jax
import jax.numpy as jnp
from jax.experimental import pallas as pl
from jax.experimental.pallas import tpu as pltpu

LANES = 128            # vreg lane width (fast axis)
ROW_ALIGN = 16         # sublane alignment covering both f32 (8) and bf16 (16)
SMALL_N_BYPASS = 2048  # below this, plain XLA elementwise is strictly faster
MAX_TILE_ROWS = 4096   # 4096x128xf32 = 2 MiB block; 2 arrays x 2 bufs = 8 MiB VMEM


def _round_up(a, m):
    return ((a + m - 1) // m) * m


def _linear_1x1_kernel(wb_ref, x_ref, o_ref):
    # wb_ref: (2,) f32 in SMEM -> [weight, bias]
    # x_ref / o_ref: (tile_rows, 128) slabs in VMEM, native input dtype.
    w = wb_ref[0]
    b = wb_ref[1]
    y = x_ref[...].astype(jnp.float32) * w + b
    o_ref[...] = y.astype(o_ref.dtype)


def _run_kernel(x2d, wb, n_elems):
    rows = x2d.shape[0]
    # Ensure >= 2 grid steps when rows allow, so v7x's two TCs both get work;
    # cap block size for VMEM safety on all generations.
    tile_rows = min(MAX_TILE_ROWS,
                    max(ROW_ALIGN, _round_up(pl.cdiv(rows, 2), ROW_ALIGN)))
    grid = (pl.cdiv(rows, tile_rows),)  # non-divisible final block is clipped
    itemsize = jnp.dtype(x2d.dtype).itemsize
    return pl.pallas_call(
        _linear_1x1_kernel,
        out_shape=jax.ShapeDtypeStruct((rows, LANES), x2d.dtype),
        grid_spec=pltpu.PrefetchScalarGridSpec(
            num_scalar_prefetch=0,
            grid=grid,
            in_specs=[
                # weight/bias: whole (2,) f32 array resident in SMEM.
                pl.BlockSpec(memory_space=pltpu.MemorySpace.SMEM),
                # lane-dense input slab, tiled over the row axis.
                pl.BlockSpec((tile_rows, LANES), lambda i: (i, 0)),
            ],
            out_specs=pl.BlockSpec((tile_rows, LANES), lambda i: (i, 0)),
        ),
        compiler_params=pltpu.CompilerParams(
            dimension_semantics=("parallel",),
        ),
        cost_estimate=pl.CostEstimate(
            flops=2 * n_elems,
            bytes_accessed=2 * n_elems * itemsize,
            transcendentals=0,
        ),
    )(wb, x2d)


def net_forward(x, weight, bias):
    """nn.Linear(1,1) forward: x (..., 1) -> (..., 1); preserves x.dtype."""
    orig_shape = x.shape
    dtype = x.dtype
    n = int(x.size)

    w = weight.reshape(()).astype(jnp.float32)
    b = bias.reshape(()).astype(jnp.float32)

    # Small / empty inputs: fused XLA elementwise beats a kernel launch.
    if n < SMALL_N_BYPASS:
        return (x.astype(jnp.float32) * w + b).astype(dtype)

    wb = jnp.stack([w, b])
    x_flat = x.reshape(-1)

    if n % LANES == 0:
        # Fast path: lane-dense reshape is free (no copy, no pad, no slice).
        rows = n // LANES
        y2d = _run_kernel(x_flat.reshape(rows, LANES), wb, n)
        return y2d.reshape(orig_shape)

    # Unaligned tail: pad only to the 128-lane boundary (<128 extra elems),
    # then drop the padding after the kernel.
    rows = pl.cdiv(n, LANES)
    n128 = rows * LANES
    x_pad = jnp.pad(x_flat, (0, n128 - n))
    y2d = _run_kernel(x_pad.reshape(rows, LANES), wb, n128)
    return y2d.reshape(-1)[:n].reshape(orig_shape)


if __name__ == "__main__":
    key = jax.random.PRNGKey(0)
    kw, kb, k1, k2, k3, k4, k5 = jax.random.split(key, 7)

    # Deterministic parameters (shapes from nn.Linear(1, 1)).
    weight = jax.random.uniform(kw, (1, 1), jnp.float32, -1.0, 1.0)
    bias = jax.random.uniform(kb, (1,), jnp.float32, -1.0, 1.0)
    w0 = weight[0, 0]
    b0 = bias[0]

    # 1) Tiny batch (bypass path).
    x1 = jax.random.normal(k1, (8, 1), jnp.float32)
    y1 = jax.block_until_ready(net_forward(x1, weight, bias))
    assert y1.shape == (8, 1) and y1.dtype == jnp.float32
    assert jnp.allclose(y1, x1 @ weight.T + bias, atol=1e-6)

    # 2) Odd tiny batch (bypass path).
    x2 = jax.random.normal(k2, (37, 1), jnp.float32)
    y2 = jax.block_until_ready(net_forward(x2, weight, bias))
    assert y2.shape == (37, 1)
    assert jnp.allclose(y2, x2 @ weight.T + bias, atol=1e-6)

    # 3) Kernel fast path: 32*128 = 4096 elements, lane-aligned, no pad/slice.
    x3 = jax.random.normal(k3, (32, 128, 1), jnp.float32)
    y3 = jax.block_until_ready(net_forward(x3, weight, bias))
    assert y3.shape == (32, 128, 1)
    assert jnp.allclose(y3, x3 * w0 + b0, atol=1e-5)

    # 4) Kernel unaligned path: 4099 elements -> pad to 128 boundary + clip.
    x4 = jax.random.normal(k4, (4099, 1), jnp.float32)
    y4 = jax.block_until_ready(net_forward(x4, weight, bias))
    assert y4.shape == (4099, 1)
    assert jnp.allclose(y4, x4 * w0 + b0, atol=1e-5)

    # 5) Kernel path with bf16 input: dtype preserved end-to-end.
    x5 = jax.random.normal(k5, (64, 64, 1), jnp.bfloat16)
    y5 = jax.block_until_ready(net_forward(x5, weight, bias))
    assert y5.shape == (64, 64, 1) and y5.dtype == jnp.bfloat16
    ref5 = x5.astype(jnp.float32) * w0 + b0
    assert jnp.allclose(y5.astype(jnp.float32), ref5, rtol=2e-2, atol=2e-2)

    print("KERNEL_OK")
</pallas_src>

<mosaic_0001>
module attributes {stable_mosaic.version = 11 : i64} {
  func.func @_linear_1x1_kernel(%arg0: i32, %arg1: memref<2xf32, #tpu.memory_space<smem>>, %arg2: memref<16x128xf32, #tpu.memory_space<vmem>>, %arg3: memref<16x128xf32, #tpu.memory_space<vmem>>) attributes {dimension_semantics = [#tpu.dimension_semantics<parallel>], iteration_bounds = array<i64: 2>, scalar_prefetch = 0 : i64, scratch_operands = 0 : i64, tpu.core_type = #tpu.core_type<tc>, window_params = [{transform_indices = @transform_0, window_bounds = array<i64: 2>}, {transform_indices = @transform_1, window_bounds = array<i64: 16, 128>}, {transform_indices = @transform_2, window_bounds = array<i64: 16, 128>}]} {
    %c0 = arith.constant 0 : index
    %0 = memref.load %arg1[%c0] : memref<2xf32, #tpu.memory_space<smem>>
    %c1 = arith.constant 1 : index
    %1 = memref.load %arg1[%c1] : memref<2xf32, #tpu.memory_space<smem>>
    %c0_0 = arith.constant 0 : index
    %c0_1 = arith.constant 0 : index
    %2 = vector.load %arg2[%c0_0, %c0_1] : memref<16x128xf32, #tpu.memory_space<vmem>>, vector<16x128xf32>
    %3 = vector.broadcast %0 : f32 to vector<16x128xf32>
    %4 = arith.mulf %2, %3 : vector<16x128xf32>
    %5 = vector.broadcast %1 : f32 to vector<16x128xf32>
    %6 = arith.addf %4, %5 : vector<16x128xf32>
    %c0_2 = arith.constant 0 : index
    %c0_3 = arith.constant 0 : index
    %7 = vector.load %arg3[%c0_2, %c0_3] : memref<16x128xf32, #tpu.memory_space<vmem>>, vector<16x128xf32>
    tpu.vector_store %arg3[%c0_2, %c0_3], %6 {strides = array<i32>} : memref<16x128xf32, #tpu.memory_space<vmem>>, vector<16x128xf32>,
    return
  }
  func.func @transform_0(%arg0: i32) -> i32 {
    %c0_i32 = arith.constant 0 : i32
    %c0_i32_0 = arith.constant 0 : i32
    return %c0_i32 : i32
  }
  func.func @transform_1(%arg0: i32) -> (i32, i32) {
    %c0_i32 = arith.constant 0 : i32
    %c0_i32_0 = arith.constant 0 : i32
    return %arg0, %c0_i32 : i32, i32
  }
  func.func @transform_2(%arg0: i32) -> (i32, i32) {
    %c0_i32 = arith.constant 0 : i32
    %c0_i32_0 = arith.constant 0 : i32
    return %arg0, %c0_i32 : i32, i32
  }
}

</mosaic_0001>

<llo_original>
// kernel: tpu_custom_call.1
$region0: #{tpu_custom_call.1}
  #allocation0 [shape = 'u32[]', space=smem, size = 0x4, offset = 0x4, fixed_abs, tag = 'smem constant byte address 0x4 - core index']
  #allocation1 [shape = 'u32[144,128]{1,0:T(1,128)}', space=vmem, size = 0x12000, scoped, tag = 'internal scratch']
  %s0 = inlined_call_operand.hbm [shape: f32[2], index: 0, kind: input, shape index: {}]
  %s1 = inlined_call_operand.hbm [shape: f32[32,128], index: 1, kind: input, shape index: {}]
  %s2 = inlined_call_operand.hbm [shape: f32[32,128], index: 2, kind: output, shape index: {}]
  %s3 = sld [smem:[#allocation0]]
  $region49: #{tpu_custom_call.1} parent=0
    _
  %s5 = ssub.s32 1, %s3
  %s6 = scalar_select 0, %s5, %s3
  $region1: #{tpu_custom_call.1} parent=0
    #allocation2 [shape = 'u8[512]{0}', space=smem, size = 0x200, scoped, tag = 'input window, operand 0, single buffered']
    #allocation3 [shape = 's32[2]{0}', space=sflag, size = 0x8, scoped, tag = 'scoped memory for tpu_custom_call.1']
    #allocation4 [shape = 's32[2]{0}', space=sflag, size = 0x8, scoped, tag = 'scoped memory for tpu_custom_call.1']
    #allocation5 [shape = 's32[2]{0}', space=sflag, size = 0x8, scoped, tag = 'scoped memory for tpu_custom_call.1']
    #allocation6 [shape = 'u8[16384]{0}', space=vmem, size = 0x4000, scoped, tag = 'input window, operand 1']
    #allocation7 [shape = 'u8[16384]{0}', space=vmem, size = 0x4000, scoped, tag = 'output window, operand 0']
    %7 = vsyncpa [#allocation5], 0
    %8 = vsyncpa [#allocation3], 0
    %s9 = scalar_lea.sflag [#allocation3], 1
    %10 = vsyncpa %s9, 0
    %11 = vsyncpa [#allocation4], 0
    %s12 = scalar_lea.sflag [#allocation4], 1
    %13 = vsyncpa %s12, 0
    loop: start=0, step=1, limit=4
    $region2: #{tpu_custom_call.1} parent=1 // loop_pre_header
      _
    $region3: #{tpu_custom_call.1} parent=1 // loop_header
      %s15 = sphi 0, %s19
      %p16 = scmp.ge.s32.totalorder %s15, 4
      %s23 = sphi 0, %s23
      %s25 = sphi 0, %s23
      %s26 = sphi 0, %s25
      %s40 = sphi 0, %s26
      %s46 = sphi 0, %s48
      %s49 = sphi 0, %s46
      %s50 = sphi 0, %s49
      %s66 = sphi 0, %s50
      %s72 = sphi 0, %s74
      %s75 = sphi 0, %s72
      %s76 = sphi 0, %s75
      %s92 = sphi 0, %s76
    $region4: #{tpu_custom_call.1} parent=1 // loop_header_branch
      %18 = sbr.rel (%p16) target = $region8
    $region5: #{tpu_custom_call.1} parent=1 // loop_body
      %s20 = ssub.s32 %s15, 1
      %s21 = ssub.s32 %s15, 2
      %s22 = sadd.s32 %s15, 1
      %s24 = sadd.s32 %s23, 1
      %p27 = scmp.eq.s32.totalorder %s15, 1
      %p28 = scmp.ne.s32.totalorder %s23, %s25
      %p29 = scmp.eq.s32.totalorder %s15, 0
      %p30 = por %p28, %p29
      %p31 = scmp.ne.s32.totalorder %s23, %s25
      %p32 = scmp.eq.s32.totalorder %s20, 1
      %p33 = por %p31, %p32
      %p34 = scmp.ne.s32.totalorder %s25, %s26
      %p35 = scmp.eq.s32.totalorder %s20, 0
      %p36 = por %p34, %p35
      %p37 = scmp.ne.s32.totalorder %s25, %s26
      %p38 = scmp.eq.s32.totalorder %s21, 1
      %p39 = por %p37, %p38
      %p41 = scmp.ne.s32.totalorder %s26, %s40
      %p42 = scmp.eq.s32.totalorder %s21, 0
      %p43 = por %p41, %p42
      %s44 = ssub.s32 %s15, %s22
      %p45 = scmp.eq.s32.totalorder %s44, 0
      %s47 = sadd.s32 %s46, 1
      %s48 = scalar_select %p45, %s46, %s47
      %p51 = pneg %p45
      %p52 = scmp.eq.s32.totalorder %s15, 1
      %p53 = por %p51, %p52
      %p54 = scmp.ne.s32.totalorder %s46, %s49
      %p55 = scmp.eq.s32.totalorder %s15, 0
      %p56 = por %p54, %p55
      %p57 = scmp.ne.s32.totalorder %s46, %s49
      %p58 = scmp.eq.s32.totalorder %s20, 1
      %p59 = por %p57, %p58
      %p60 = scmp.ne.s32.totalorder %s49, %s50
      %p61 = scmp.eq.s32.totalorder %s20, 0
      %p62 = por %p60, %p61
      %p63 = scmp.ne.s32.totalorder %s49, %s50
      %p64 = scmp.eq.s32.totalorder %s21, 1
      %p65 = por %p63, %p64
      %p67 = scmp.ne.s32.totalorder %s50, %s66
      %p68 = scmp.eq.s32.totalorder %s21, 0
      %p69 = por %p67, %p68
      %s70 = ssub.s32 %s15, %s22
      %p71 = scmp.eq.s32.totalorder %s70, 0
      %s73 = sadd.s32 %s72, 1
      %s74 = scalar_select %p71, %s72, %s73
      %p77 = pneg %p71
      %p78 = scmp.eq.s32.totalorder %s15, 1
      %p79 = por %p77, %p78
      %p80 = scmp.ne.s32.totalorder %s72, %s75
      %p81 = scmp.eq.s32.totalorder %s15, 0
      %p82 = por %p80, %p81
      %p83 = scmp.ne.s32.totalorder %s72, %s75
      %p84 = scmp.eq.s32.totalorder %s20, 1
      %p85 = por %p83, %p84
      %p86 = scmp.ne.s32.totalorder %s75, %s76
      %p87 = scmp.eq.s32.totalorder %s20, 0
      %p88 = por %p86, %p87
      %p89 = scmp.ne.s32.totalorder %s75, %s76
      %p90 = scmp.eq.s32.totalorder %s21, 1
      %p91 = por %p89, %p90
      %p93 = scmp.ne.s32.totalorder %s76, %s92
      %p94 = scmp.eq.s32.totalorder %s21, 0
      %p95 = por %p93, %p94
      %p96 = scmp.le.s32.totalorder 1, %s15
      %p97 = scmp.lt.s32.totalorder %s15, 3
      %p98 = pnand %p96, %p97
      %p99 = pneg %p98
      // Predicated region
      $region9: #{tpu_custom_call.1} parent=5 // pred_check
        _
      $region10: #{tpu_custom_call.1} parent=5 // pred_check_branch
        %101 = sbr.rel (%p98) target = $region12
      $region11: #{tpu_custom_call.1} parent=5 // pred_region
        %s102 = ssub.s32 %s15, 1
        // Predicated region
        $region13: #{tpu_custom_call.1} parent=11 // pred_check
          %p103 = pneg %p36
        $region14: #{tpu_custom_call.1} parent=11 // pred_check_branch
          %105 = sbr.rel (%p103) target = $region16
        $region15: #{tpu_custom_call.1} parent=11 // pred_region
          %s107 = ssub.s32 16, 16
          %108 = vsyncadd [#allocation5], %s107
          %111 = dma.hbm_to_smem %s0, 16, [#allocation2], [#allocation5]
        $region16: #{tpu_custom_call.1} parent=11 // pred_fallthru
          _
      $region12: #{tpu_custom_call.1} parent=5 // pred_fallthru
        _
      %p112 = scmp.lt.s32.totalorder %s15, 2
      // Predicated region
      $region17: #{tpu_custom_call.1} parent=5 // pred_check
        %p113 = pneg %p112
      $region18: #{tpu_custom_call.1} parent=5 // pred_check_branch
        %115 = sbr.rel (%p113) target = $region20
      $region19: #{tpu_custom_call.1} parent=5 // pred_region
        // Predicated region
        $region21: #{tpu_custom_call.1} parent=19 // pred_check
          %p116 = pneg %p56
        $region22: #{tpu_custom_call.1} parent=19 // pred_check_branch
          %118 = sbr.rel (%p116) target = $region24
        $region23: #{tpu_custom_call.1} parent=19 // pred_region
          %s119 = sand.u32 %s46, 1
          %s120 = scalar_lea.sflag [#allocation3], %s119
          %s121 = sand.u32 %s46, 1
          %s122 = smul.addr %s121, 16
          %s123 = scalar_lea.vmem [#allocation6], %s122
          %s124 = smul.u32 2, %s15
          %s126 = ssub.s32 256, 256
          %127 = vsyncadd %s120, %s126
          %s128 = smul.addr %s124, 128
          %s129 = scalar_lea.hbm %s1, %s128
          %s130 = sshll.u32 %s123, 4
          %s131 = int_to_ptr.vmem [resolvable:$true] %s130
          %136 = dma.hbm_to_vmem [thread:$0]  %s129, 256, %s131, %s120, 128, 128, 8
        $region24: #{tpu_custom_call.1} parent=19 // pred_fallthru
          _
      $region20: #{tpu_custom_call.1} parent=5 // pred_fallthru
        _
      %p137 = scmp.le.s32.totalorder 1, %s15
      %p138 = scmp.lt.s32.totalorder %s15, 3
      %p139 = pnand %p137, %p138
      %p140 = pneg %p139
      // Predicated region
      $region25: #{tpu_custom_call.1} parent=5 // pred_check
        _
      $region26: #{tpu_custom_call.1} parent=5 // pred_check_branch
        %142 = sbr.rel (%p139) target = $region28
      $region27: #{tpu_custom_call.1} parent=5 // pred_region
        %s143 = ssub.s32 %s15, 1
        // Predicated region
        $region29: #{tpu_custom_call.1} parent=27 // pred_check
          %p144 = pneg %p36
        $region30: #{tpu_custom_call.1} parent=27 // pred_check_branch
          %146 = sbr.rel (%p144) target = $region32
        $region31: #{tpu_custom_call.1} parent=27 // pred_region
          %147 = dma.done [#allocation5], 16
        $region32: #{tpu_custom_call.1} parent=27 // pred_fallthru
          _
        %s148 = sand.u32 %s49, 1
        %s149 = scalar_lea.sflag [#allocation3], %s148
        %s150 = sand.u32 %s49, 1
        %s151 = smul.addr %s150, 16
        %s152 = scalar_lea.vmem [#allocation6], %s151
        // Predicated region
        $region33: #{tpu_custom_call.1} parent=27 // pred_check
          %p153 = pneg %p62
        $region34: #{tpu_custom_call.1} parent=27 // pred_check_branch
          %155 = sbr.rel (%p153) target = $region36
        $region35: #{tpu_custom_call.1} parent=27 // pred_region
          %156 = dma.done %s149, 256
        $region36: #{tpu_custom_call.1} parent=27 // pred_fallthru
          _
        %157 = sfence
        %p158 = pneg %p36
        %p159 = pneg %p33
        %s160 = sand.u32 %s49, 1
        %s161 = scalar_lea.sflag [#allocation3], %s160
        %s162 = sand.u32 %s49, 1
        %s163 = smul.addr %s162, 16
        %s164 = scalar_lea.vmem [#allocation6], %s163
        %p165 = pneg %p62
        %p166 = pneg %p59
        %p167 = pneg %p88
        %p168 = pneg %p85
        %s169 = sand.u32 %s75, 1
        %s170 = scalar_lea.sflag [#allocation4], %s169
        %s171 = sand.u32 %s75, 1
        %s172 = smul.addr %s171, 16
        %s173 = scalar_lea.vmem [#allocation7], %s172
        %s174 = smul.u32 2, %s20
        %s175 = smul.u32 2, %s20
        %s176 = sld [smem:[#allocation2]]
        %s177 = sld [smem:[#allocation2 + $0x1]]
        %v178 = vld [vmem:[%s152] sm:$0xff]
        %v179 = vld [vmem:[%s152 + $0x8] sm:$0xff]
        %v180 = vstv %s176
        %v181 = vmul.f32 %v178, %v180
        %v182 = vmul.f32 %v179, %v180
        %v183 = vstv %s177
        %v184 = vadd.f32 %v181, %v183
        %v185 = vadd.f32 %v182, %v183
        %186 = vst [vmem:[%s173] sm:$0xff] %v184
        %187 = vst [vmem:[%s173 + $0x8] sm:$0xff] %v185
        %s188 = sand.u32 %s75, 1
        %s189 = scalar_lea.sflag [#allocation4], %s188
        %s190 = sand.u32 %s75, 1
        %s191 = smul.addr %s190, 16
        %s192 = scalar_lea.vmem [#allocation7], %s191
        // Predicated region
        $region37: #{tpu_custom_call.1} parent=27 // pred_check
          %p193 = pneg %p85
        $region38: #{tpu_custom_call.1} parent=27 // pred_check_branch
          %195 = sbr.rel (%p193) target = $region40
        $region39: #{tpu_custom_call.1} parent=27 // pred_region
          %s196 = smul.u32 2, %s20
          %s198 = ssub.s32 256, 256
          %199 = vsyncadd %s189, %s198
          %s200 = smul.addr %s196, 128
          %s201 = scalar_lea.hbm %s2, %s200
          %s202 = sshll.u32 %s192, 4
          %s203 = int_to_ptr.vmem [resolvable:$true] %s202
          %208 = dma.vmem_to_hbm [thread:$0]  %s203, 256, %s201, %s189, 128, 128, 8
        $region40: #{tpu_custom_call.1} parent=27 // pred_fallthru
          _
      $region28: #{tpu_custom_call.1} parent=5 // pred_fallthru
        _
      %p209 = scmp.le.s32.totalorder 2, %s15
      // Predicated region
      $region41: #{tpu_custom_call.1} parent=5 // pred_check
        %p210 = pneg %p209
      $region42: #{tpu_custom_call.1} parent=5 // pred_check_branch
        %212 = sbr.rel (%p210) target = $region44
      $region43: #{tpu_custom_call.1} parent=5 // pred_region
        %s213 = ssub.s32 %s15, 2
        // Predicated region
        $region45: #{tpu_custom_call.1} parent=43 // pred_check
          %p214 = pneg %p91
        $region46: #{tpu_custom_call.1} parent=43 // pred_check_branch
          %216 = sbr.rel (%p214) target = $region48
        $region47: #{tpu_custom_call.1} parent=43 // pred_region
          %s217 = sand.u32 %s76, 1
          %s218 = scalar_lea.sflag [#allocation4], %s217
          %s219 = sand.u32 %s76, 1
          %s220 = smul.addr %s219, 16
          %s221 = scalar_lea.vmem [#allocation7], %s220
          %222 = dma.done %s218, 256
        $region48: #{tpu_custom_call.1} parent=43 // pred_fallthru
          _
      $region44: #{tpu_custom_call.1} parent=5 // pred_fallthru
        _
    $region6: #{tpu_custom_call.1} parent=1 // loop_footer
      %s19 = sadd.s32 1, %s15
    $region7: #{tpu_custom_call.1} parent=1 // loop_footer_branch
      %14 = sbr.rel target = $region3
    $region8: #{tpu_custom_call.1} parent=1 // loop_exit
      _
    %223 = vsyncpa [#allocation3], 1
    %s224 = scalar_lea.sflag [#allocation3], 1
    %225 = vsyncpa %s224, 1
    %226 = vsyncpa [#allocation4], 1
    %s227 = scalar_lea.sflag [#allocation4], 1
    %228 = vsyncpa %s227, 1
    %229 = vsyncpa [#allocation5], 1
    %s230 = scalar_lea.sflag [#allocation5], 1
    %231 = vsyncpa %s230, 1

</llo_original>
